<compile_context>
chip_gen: v5e
topology: v5e:2x2
jax: 0.10.0
libtpu: 0.0.40
codegen_flags: <defaults>
</compile_context>

<pallas_src>
import functools

import jax
import jax.numpy as jnp
from jax.experimental import pallas as pl
from jax.experimental.pallas import tpu as pltpu


def _cat_slice_cat_dma_kernel(c, hw, x1, x2, x3, x4, x5, x6, o, sems):
    """Eight HBM->HBM DMAs realize cat([cat(x1,x2,x3), x1[:, :1],
    cat(x4,x5,x6), x4[:, :1]], dim=1) on the flattened (N, C*H*W) layout."""
    chw = c * hw
    # (source ref/view, element offset along the flattened channel axis, size)
    pieces = (
        (x1,             0 * chw,      chw),   # v1 = cat([x1, x2, x3], dim=1)
        (x2,             1 * chw,      chw),
        (x3,             2 * chw,      chw),
        (x1.at[:, 0:hw], 3 * chw,      hw),    # v3 = v1[:, 0:1]   (== x1[:, 0:1])
        (x4,             3 * chw + hw, chw),   # v5 = cat([x4, x5, x6], dim=1)
        (x5,             4 * chw + hw, chw),
        (x6,             5 * chw + hw, chw),
        (x4.at[:, 0:hw], 6 * chw + hw, hw),    # v6 = v5[:, 0:1]   (== x4[:, 0:1])
    )
    copies = [
        pltpu.make_async_copy(src, o.at[:, off:off + size], sems.at[i])
        for i, (src, off, size) in enumerate(pieces)
    ]
    for cp in copies:   # launch all eight; they overlap on the DMA engines
        cp.start()
    for cp in copies:
        cp.wait()


def model_forward(x1, x2, x3, x4, x5, x6):
    n, c, h, w = x1.shape
    hw = h * w
    out_c = 6 * c + 2

    # Free reshape: channel concat in NCHW == contiguous slab concat on the
    # flattened last axis.
    flat = [x.reshape(n, c * hw) for x in (x1, x2, x3, x4, x5, x6)]

    kernel = functools.partial(_cat_slice_cat_dma_kernel, c, hw)
    out_flat = pl.pallas_call(
        kernel,
        out_shape=jax.ShapeDtypeStruct((n, out_c * hw), x1.dtype),
        in_specs=[pl.BlockSpec(memory_space=pl.ANY)] * 6,
        out_specs=pl.BlockSpec(memory_space=pl.ANY),
        scratch_shapes=[pltpu.SemaphoreType.DMA((8,))],
    )(*flat)
    return out_flat.reshape(n, out_c, h, w)


def _reference(x1, x2, x3, x4, x5, x6):
    v1 = jnp.concatenate([x1, x2, x3], axis=1)
    v3 = v1[:, 0:1]
    v4 = jnp.concatenate([v1, v3], axis=1)
    v5 = jnp.concatenate([x4, x5, x6], axis=1)
    v6 = v5[:, 0:1]
    v7 = jnp.concatenate([v5, v6], axis=1)
    return jnp.concatenate([v4, v7], axis=1)


if __name__ == "__main__":
    # Small, mutually-consistent shapes (channel concat requires matching
    # N/H/W; the original spec's mismatched spatial sizes would reject in
    # torch.cat as well).
    N, C, H, W = 2, 4, 16, 16
    keys = jax.random.split(jax.random.PRNGKey(0), 6)
    xs = [jax.random.normal(k, (N, C, H, W), dtype=jnp.float32) for k in keys]

    out = model_forward(*xs)
    out = jax.block_until_ready(out)

    ref = _reference(*xs)
    assert out.shape == (N, 6 * C + 2, H, W), out.shape
    assert jnp.allclose(out, ref), "mismatch vs reference"
    print("KERNEL_OK")
</pallas_src>

<mosaic_0001>
module attributes {stable_mosaic.version = 11 : i64} {
  func.func @_cat_slice_cat_dma_kernel(%arg0: memref<2x1024xf32, #tpu.memory_space<any>>, %arg1: memref<2x1024xf32, #tpu.memory_space<any>>, %arg2: memref<2x1024xf32, #tpu.memory_space<any>>, %arg3: memref<2x1024xf32, #tpu.memory_space<any>>, %arg4: memref<2x1024xf32, #tpu.memory_space<any>>, %arg5: memref<2x1024xf32, #tpu.memory_space<any>>, %arg6: memref<2x6656xf32, #tpu.memory_space<any>>, %arg7: memref<8x!tpu.dma_semaphore, #tpu.memory_space<semaphore_mem>>) attributes {dimension_semantics = [], scalar_prefetch = 0 : i64, scratch_operands = 1 : i64, tpu.core_type = #tpu.core_type<tc>} {
    %c0_i32 = arith.constant 0 : i32
    %c0_i32_0 = arith.constant 0 : i32
    %c0_i32_1 = arith.constant 0 : i32
    %0 = tpu.memref_slice %arg6[%c0_i32_0, %c0_i32_1] : memref<2x6656xf32, #tpu.memory_space<any>> -> memref<2x1024xf32, #tpu.memory_space<any>>
    %1 = tpu.memref_slice %arg7[%c0_i32] : memref<8x!tpu.dma_semaphore, #tpu.memory_space<semaphore_mem>> -> memref<1x!tpu.dma_semaphore, #tpu.memory_space<semaphore_mem>>
    %2 = tpu.memref_squeeze %1 : memref<1x!tpu.dma_semaphore, #tpu.memory_space<semaphore_mem>> -> memref<!tpu.dma_semaphore, #tpu.memory_space<semaphore_mem>>
    tpu.enqueue_dma source(%arg0 : memref<2x1024xf32, #tpu.memory_space<any>>) target(%0 : memref<2x1024xf32, #tpu.memory_space<any>>) target_semaphore(%2 : memref<!tpu.dma_semaphore, #tpu.memory_space<semaphore_mem>>)
    %c1_i32 = arith.constant 1 : i32
    %c0_i32_2 = arith.constant 0 : i32
    %c1024_i32 = arith.constant 1024 : i32
    %3 = tpu.memref_slice %arg6[%c0_i32_2, %c1024_i32] : memref<2x6656xf32, #tpu.memory_space<any>> -> memref<2x1024xf32, #tpu.memory_space<any>>
    %4 = tpu.memref_slice %arg7[%c1_i32] : memref<8x!tpu.dma_semaphore, #tpu.memory_space<semaphore_mem>> -> memref<1x!tpu.dma_semaphore, #tpu.memory_space<semaphore_mem>>
    %5 = tpu.memref_squeeze %4 : memref<1x!tpu.dma_semaphore, #tpu.memory_space<semaphore_mem>> -> memref<!tpu.dma_semaphore, #tpu.memory_space<semaphore_mem>>
    tpu.enqueue_dma source(%arg1 : memref<2x1024xf32, #tpu.memory_space<any>>) target(%3 : memref<2x1024xf32, #tpu.memory_space<any>>) target_semaphore(%5 : memref<!tpu.dma_semaphore, #tpu.memory_space<semaphore_mem>>)
    %c2_i32 = arith.constant 2 : i32
    %c0_i32_3 = arith.constant 0 : i32
    %c2048_i32 = arith.constant 2048 : i32
    %6 = tpu.memref_slice %arg6[%c0_i32_3, %c2048_i32] : memref<2x6656xf32, #tpu.memory_space<any>> -> memref<2x1024xf32, #tpu.memory_space<any>>
    %7 = tpu.memref_slice %arg7[%c2_i32] : memref<8x!tpu.dma_semaphore, #tpu.memory_space<semaphore_mem>> -> memref<1x!tpu.dma_semaphore, #tpu.memory_space<semaphore_mem>>
    %8 = tpu.memref_squeeze %7 : memref<1x!tpu.dma_semaphore, #tpu.memory_space<semaphore_mem>> -> memref<!tpu.dma_semaphore, #tpu.memory_space<semaphore_mem>>
    tpu.enqueue_dma source(%arg2 : memref<2x1024xf32, #tpu.memory_space<any>>) target(%6 : memref<2x1024xf32, #tpu.memory_space<any>>) target_semaphore(%8 : memref<!tpu.dma_semaphore, #tpu.memory_space<semaphore_mem>>)
    %c3_i32 = arith.constant 3 : i32
    %c0_i32_4 = arith.constant 0 : i32
    %c0_i32_5 = arith.constant 0 : i32
    %9 = tpu.memref_slice %arg0[%c0_i32_4, %c0_i32_5] : memref<2x1024xf32, #tpu.memory_space<any>> -> memref<2x256xf32, #tpu.memory_space<any>>
    %c0_i32_6 = arith.constant 0 : i32
    %c3072_i32 = arith.constant 3072 : i32
    %10 = tpu.memref_slice %arg6[%c0_i32_6, %c3072_i32] : memref<2x6656xf32, #tpu.memory_space<any>> -> memref<2x256xf32, #tpu.memory_space<any>>
    %11 = tpu.memref_slice %arg7[%c3_i32] : memref<8x!tpu.dma_semaphore, #tpu.memory_space<semaphore_mem>> -> memref<1x!tpu.dma_semaphore, #tpu.memory_space<semaphore_mem>>
    %12 = tpu.memref_squeeze %11 : memref<1x!tpu.dma_semaphore, #tpu.memory_space<semaphore_mem>> -> memref<!tpu.dma_semaphore, #tpu.memory_space<semaphore_mem>>
    tpu.enqueue_dma source(%9 : memref<2x256xf32, #tpu.memory_space<any>>) target(%10 : memref<2x256xf32, #tpu.memory_space<any>>) target_semaphore(%12 : memref<!tpu.dma_semaphore, #tpu.memory_space<semaphore_mem>>)
    %c4_i32 = arith.constant 4 : i32
    %c0_i32_7 = arith.constant 0 : i32
    %c3328_i32 = arith.constant 3328 : i32
    %13 = tpu.memref_slice %arg6[%c0_i32_7, %c3328_i32] : memref<2x6656xf32, #tpu.memory_space<any>> -> memref<2x1024xf32, #tpu.memory_space<any>>
    %14 = tpu.memref_slice %arg7[%c4_i32] : memref<8x!tpu.dma_semaphore, #tpu.memory_space<semaphore_mem>> -> memref<1x!tpu.dma_semaphore, #tpu.memory_space<semaphore_mem>>
    %15 = tpu.memref_squeeze %14 : memref<1x!tpu.dma_semaphore, #tpu.memory_space<semaphore_mem>> -> memref<!tpu.dma_semaphore, #tpu.memory_space<semaphore_mem>>
    tpu.enqueue_dma source(%arg3 : memref<2x1024xf32, #tpu.memory_space<any>>) target(%13 : memref<2x1024xf32, #tpu.memory_space<any>>) target_semaphore(%15 : memref<!tpu.dma_semaphore, #tpu.memory_space<semaphore_mem>>)
    %c5_i32 = arith.constant 5 : i32
    %c0_i32_8 = arith.constant 0 : i32
    %c4352_i32 = arith.constant 4352 : i32
    %16 = tpu.memref_slice %arg6[%c0_i32_8, %c4352_i32] : memref<2x6656xf32, #tpu.memory_space<any>> -> memref<2x1024xf32, #tpu.memory_space<any>>
    %17 = tpu.memref_slice %arg7[%c5_i32] : memref<8x!tpu.dma_semaphore, #tpu.memory_space<semaphore_mem>> -> memref<1x!tpu.dma_semaphore, #tpu.memory_space<semaphore_mem>>
    %18 = tpu.memref_squeeze %17 : memref<1x!tpu.dma_semaphore, #tpu.memory_space<semaphore_mem>> -> memref<!tpu.dma_semaphore, #tpu.memory_space<semaphore_mem>>
    tpu.enqueue_dma source(%arg4 : memref<2x1024xf32, #tpu.memory_space<any>>) target(%16 : memref<2x1024xf32, #tpu.memory_space<any>>) target_semaphore(%18 : memref<!tpu.dma_semaphore, #tpu.memory_space<semaphore_mem>>)
    %c6_i32 = arith.constant 6 : i32
    %c0_i32_9 = arith.constant 0 : i32
    %c5376_i32 = arith.constant 5376 : i32
    %19 = tpu.memref_slice %arg6[%c0_i32_9, %c5376_i32] : memref<2x6656xf32, #tpu.memory_space<any>> -> memref<2x1024xf32, #tpu.memory_space<any>>
    %20 = tpu.memref_slice %arg7[%c6_i32] : memref<8x!tpu.dma_semaphore, #tpu.memory_space<semaphore_mem>> -> memref<1x!tpu.dma_semaphore, #tpu.memory_space<semaphore_mem>>
    %21 = tpu.memref_squeeze %20 : memref<1x!tpu.dma_semaphore, #tpu.memory_space<semaphore_mem>> -> memref<!tpu.dma_semaphore, #tpu.memory_space<semaphore_mem>>
    tpu.enqueue_dma source(%arg5 : memref<2x1024xf32, #tpu.memory_space<any>>) target(%19 : memref<2x1024xf32, #tpu.memory_space<any>>) target_semaphore(%21 : memref<!tpu.dma_semaphore, #tpu.memory_space<semaphore_mem>>)
    %c7_i32 = arith.constant 7 : i32
    %c0_i32_10 = arith.constant 0 : i32
    %c0_i32_11 = arith.constant 0 : i32
    %22 = tpu.memref_slice %arg3[%c0_i32_10, %c0_i32_11] : memref<2x1024xf32, #tpu.memory_space<any>> -> memref<2x256xf32, #tpu.memory_space<any>>
    %c0_i32_12 = arith.constant 0 : i32
    %c6400_i32 = arith.constant 6400 : i32
    %23 = tpu.memref_slice %arg6[%c0_i32_12, %c6400_i32] : memref<2x6656xf32, #tpu.memory_space<any>> -> memref<2x256xf32, #tpu.memory_space<any>>
    %24 = tpu.memref_slice %arg7[%c7_i32] : memref<8x!tpu.dma_semaphore, #tpu.memory_space<semaphore_mem>> -> memref<1x!tpu.dma_semaphore, #tpu.memory_space<semaphore_mem>>
    %25 = tpu.memref_squeeze %24 : memref<1x!tpu.dma_semaphore, #tpu.memory_space<semaphore_mem>> -> memref<!tpu.dma_semaphore, #tpu.memory_space<semaphore_mem>>
    tpu.enqueue_dma source(%22 : memref<2x256xf32, #tpu.memory_space<any>>) target(%23 : memref<2x256xf32, #tpu.memory_space<any>>) target_semaphore(%25 : memref<!tpu.dma_semaphore, #tpu.memory_space<semaphore_mem>>)
    %c0_i32_13 = arith.constant 0 : i32
    %c0_i32_14 = arith.constant 0 : i32
    %c0_i32_15 = arith.constant 0 : i32
    %26 = tpu.memref_slice %arg6[%c0_i32_14, %c0_i32_15] : memref<2x6656xf32, #tpu.memory_space<any>> -> memref<2x1024xf32, #tpu.memory_space<any>>
    %27 = tpu.memref_slice %arg7[%c0_i32_13] : memref<8x!tpu.dma_semaphore, #tpu.memory_space<semaphore_mem>> -> memref<1x!tpu.dma_semaphore, #tpu.memory_space<semaphore_mem>>
    %28 = tpu.memref_squeeze %27 : memref<1x!tpu.dma_semaphore, #tpu.memory_space<semaphore_mem>> -> memref<!tpu.dma_semaphore, #tpu.memory_space<semaphore_mem>>
    tpu.wait_dma2 semaphore(%28 : memref<!tpu.dma_semaphore, #tpu.memory_space<semaphore_mem>>) src(%arg0 : memref<2x1024xf32, #tpu.memory_space<any>>) dst(%26 : memref<2x1024xf32, #tpu.memory_space<any>>)
    %c1_i32_16 = arith.constant 1 : i32
    %c0_i32_17 = arith.constant 0 : i32
    %c1024_i32_18 = arith.constant 1024 : i32
    %29 = tpu.memref_slice %arg6[%c0_i32_17, %c1024_i32_18] : memref<2x6656xf32, #tpu.memory_space<any>> -> memref<2x1024xf32, #tpu.memory_space<any>>
    %30 = tpu.memref_slice %arg7[%c1_i32_16] : memref<8x!tpu.dma_semaphore, #tpu.memory_space<semaphore_mem>> -> memref<1x!tpu.dma_semaphore, #tpu.memory_space<semaphore_mem>>
    %31 = tpu.memref_squeeze %30 : memref<1x!tpu.dma_semaphore, #tpu.memory_space<semaphore_mem>> -> memref<!tpu.dma_semaphore, #tpu.memory_space<semaphore_mem>>
    tpu.wait_dma2 semaphore(%31 : memref<!tpu.dma_semaphore, #tpu.memory_space<semaphore_mem>>) src(%arg1 : memref<2x1024xf32, #tpu.memory_space<any>>) dst(%29 : memref<2x1024xf32, #tpu.memory_space<any>>)
    %c2_i32_19 = arith.constant 2 : i32
    %c0_i32_20 = arith.constant 0 : i32
    %c2048_i32_21 = arith.constant 2048 : i32
    %32 = tpu.memref_slice %arg6[%c0_i32_20, %c2048_i32_21] : memref<2x6656xf32, #tpu.memory_space<any>> -> memref<2x1024xf32, #tpu.memory_space<any>>
    %33 = tpu.memref_slice %arg7[%c2_i32_19] : memref<8x!tpu.dma_semaphore, #tpu.memory_space<semaphore_mem>> -> memref<1x!tpu.dma_semaphore, #tpu.memory_space<semaphore_mem>>
    %34 = tpu.memref_squeeze %33 : memref<1x!tpu.dma_semaphore, #tpu.memory_space<semaphore_mem>> -> memref<!tpu.dma_semaphore, #tpu.memory_space<semaphore_mem>>
    tpu.wait_dma2 semaphore(%34 : memref<!tpu.dma_semaphore, #tpu.memory_space<semaphore_mem>>) src(%arg2 : memref<2x1024xf32, #tpu.memory_space<any>>) dst(%32 : memref<2x1024xf32, #tpu.memory_space<any>>)
    %c3_i32_22 = arith.constant 3 : i32
    %c0_i32_23 = arith.constant 0 : i32
    %c0_i32_24 = arith.constant 0 : i32
    %35 = tpu.memref_slice %arg0[%c0_i32_23, %c0_i32_24] : memref<2x1024xf32, #tpu.memory_space<any>> -> memref<2x256xf32, #tpu.memory_space<any>>
    %c0_i32_25 = arith.constant 0 : i32
    %c3072_i32_26 = arith.constant 3072 : i32
    %36 = tpu.memref_slice %arg6[%c0_i32_25, %c3072_i32_26] : memref<2x6656xf32, #tpu.memory_space<any>> -> memref<2x256xf32, #tpu.memory_space<any>>
    %37 = tpu.memref_slice %arg7[%c3_i32_22] : memref<8x!tpu.dma_semaphore, #tpu.memory_space<semaphore_mem>> -> memref<1x!tpu.dma_semaphore, #tpu.memory_space<semaphore_mem>>
    %38 = tpu.memref_squeeze %37 : memref<1x!tpu.dma_semaphore, #tpu.memory_space<semaphore_mem>> -> memref<!tpu.dma_semaphore, #tpu.memory_space<semaphore_mem>>
    tpu.wait_dma2 semaphore(%38 : memref<!tpu.dma_semaphore, #tpu.memory_space<semaphore_mem>>) src(%35 : memref<2x256xf32, #tpu.memory_space<any>>) dst(%36 : memref<2x256xf32, #tpu.memory_space<any>>)
    %c4_i32_27 = arith.constant 4 : i32
    %c0_i32_28 = arith.constant 0 : i32
    %c3328_i32_29 = arith.constant 3328 : i32
    %39 = tpu.memref_slice %arg6[%c0_i32_28, %c3328_i32_29] : memref<2x6656xf32, #tpu.memory_space<any>> -> memref<2x1024xf32, #tpu.memory_space<any>>
    %40 = tpu.memref_slice %arg7[%c4_i32_27] : memref<8x!tpu.dma_semaphore, #tpu.memory_space<semaphore_mem>> -> memref<1x!tpu.dma_semaphore, #tpu.memory_space<semaphore_mem>>
    %41 = tpu.memref_squeeze %40 : memref<1x!tpu.dma_semaphore, #tpu.memory_space<semaphore_mem>> -> memref<!tpu.dma_semaphore, #tpu.memory_space<semaphore_mem>>
    tpu.wait_dma2 semaphore(%41 : memref<!tpu.dma_semaphore, #tpu.memory_space<semaphore_mem>>) src(%arg3 : memref<2x1024xf32, #tpu.memory_space<any>>) dst(%39 : memref<2x1024xf32, #tpu.memory_space<any>>)
    %c5_i32_30 = arith.constant 5 : i32
    %c0_i32_31 = arith.constant 0 : i32
    %c4352_i32_32 = arith.constant 4352 : i32
    %42 = tpu.memref_slice %arg6[%c0_i32_31, %c4352_i32_32] : memref<2x6656xf32, #tpu.memory_space<any>> -> memref<2x1024xf32, #tpu.memory_space<any>>
    %43 = tpu.memref_slice %arg7[%c5_i32_30] : memref<8x!tpu.dma_semaphore, #tpu.memory_space<semaphore_mem>> -> memref<1x!tpu.dma_semaphore, #tpu.memory_space<semaphore_mem>>
    %44 = tpu.memref_squeeze %43 : memref<1x!tpu.dma_semaphore, #tpu.memory_space<semaphore_mem>> -> memref<!tpu.dma_semaphore, #tpu.memory_space<semaphore_mem>>
    tpu.wait_dma2 semaphore(%44 : memref<!tpu.dma_semaphore, #tpu.memory_space<semaphore_mem>>) src(%arg4 : memref<2x1024xf32, #tpu.memory_space<any>>) dst(%42 : memref<2x1024xf32, #tpu.memory_space<any>>)
    %c6_i32_33 = arith.constant 6 : i32
    %c0_i32_34 = arith.constant 0 : i32
    %c5376_i32_35 = arith.constant 5376 : i32
    %45 = tpu.memref_slice %arg6[%c0_i32_34, %c5376_i32_35] : memref<2x6656xf32, #tpu.memory_space<any>> -> memref<2x1024xf32, #tpu.memory_space<any>>
    %46 = tpu.memref_slice %arg7[%c6_i32_33] : memref<8x!tpu.dma_semaphore, #tpu.memory_space<semaphore_mem>> -> memref<1x!tpu.dma_semaphore, #tpu.memory_space<semaphore_mem>>
    %47 = tpu.memref_squeeze %46 : memref<1x!tpu.dma_semaphore, #tpu.memory_space<semaphore_mem>> -> memref<!tpu.dma_semaphore, #tpu.memory_space<semaphore_mem>>
    tpu.wait_dma2 semaphore(%47 : memref<!tpu.dma_semaphore, #tpu.memory_space<semaphore_mem>>) src(%arg5 : memref<2x1024xf32, #tpu.memory_space<any>>) dst(%45 : memref<2x1024xf32, #tpu.memory_space<any>>)
    %c7_i32_36 = arith.constant 7 : i32
    %c0_i32_37 = arith.constant 0 : i32
    %c0_i32_38 = arith.constant 0 : i32
    %48 = tpu.memref_slice %arg3[%c0_i32_37, %c0_i32_38] : memref<2x1024xf32, #tpu.memory_space<any>> -> memref<2x256xf32, #tpu.memory_space<any>>
    %c0_i32_39 = arith.constant 0 : i32
    %c6400_i32_40 = arith.constant 6400 : i32
    %49 = tpu.memref_slice %arg6[%c0_i32_39, %c6400_i32_40] : memref<2x6656xf32, #tpu.memory_space<any>> -> memref<2x256xf32, #tpu.memory_space<any>>
    %50 = tpu.memref_slice %arg7[%c7_i32_36] : memref<8x!tpu.dma_semaphore, #tpu.memory_space<semaphore_mem>> -> memref<1x!tpu.dma_semaphore, #tpu.memory_space<semaphore_mem>>
    %51 = tpu.memref_squeeze %50 : memref<1x!tpu.dma_semaphore, #tpu.memory_space<semaphore_mem>> -> memref<!tpu.dma_semaphore, #tpu.memory_space<semaphore_mem>>
    tpu.wait_dma2 semaphore(%51 : memref<!tpu.dma_semaphore, #tpu.memory_space<semaphore_mem>>) src(%48 : memref<2x256xf32, #tpu.memory_space<any>>) dst(%49 : memref<2x256xf32, #tpu.memory_space<any>>)
    return
  }
}

</mosaic_0001>

<llo_original>
// kernel: tpu_custom_call.1
$region0: #{tpu_custom_call.1}
  #allocation0 [shape = 'u32[]', space=smem, size = 0x4, offset = 0x4, fixed_abs, tag = 'smem constant byte address 0x4 - core index']
  #allocation1 [shape = 'u32[72,128]{1,0:T(1,128)}', space=vmem, size = 0x9000, scoped, tag = 'internal scratch']
  #allocation2 [shape = 's32[8]{0}', space=sflag, size = 0x20, scoped, tag = 'scratch operand']
  #allocation3 [shape = 's32[]', space=sflag, size = 0x4, offset = 0, fixed_abs, tag = 'sflag constant byte address 0x0 - dummy sync flag']
  #allocation4 [shape = 'u32[0]{0}', space=smem, size = 0, offset = 0, fixed_abs, tag = 'smem constant byte address 0x0 - null']
  #allocation5 [shape = 's32[]', space=sflag, size = 0x4, offset = 0, fixed_abs, tag = 'sflag constant byte address 0x0 - dummy sync flag']
  #allocation6 [shape = 'u32[0]{0}', space=smem, size = 0, offset = 0, fixed_abs, tag = 'smem constant byte address 0x0 - null']
  #allocation7 [shape = 's32[]', space=sflag, size = 0x4, offset = 0, fixed_abs, tag = 'sflag constant byte address 0x0 - dummy sync flag']
  #allocation8 [shape = 'u32[0]{0}', space=smem, size = 0, offset = 0, fixed_abs, tag = 'smem constant byte address 0x0 - null']
  #allocation9 [shape = 's32[]', space=sflag, size = 0x4, offset = 0, fixed_abs, tag = 'sflag constant byte address 0x0 - dummy sync flag']
  #allocation10 [shape = 'u32[0]{0}', space=smem, size = 0, offset = 0, fixed_abs, tag = 'smem constant byte address 0x0 - null']
  #allocation11 [shape = 's32[]', space=sflag, size = 0x4, offset = 0, fixed_abs, tag = 'sflag constant byte address 0x0 - dummy sync flag']
  #allocation12 [shape = 'u32[0]{0}', space=smem, size = 0, offset = 0, fixed_abs, tag = 'smem constant byte address 0x0 - null']
  #allocation13 [shape = 's32[]', space=sflag, size = 0x4, offset = 0, fixed_abs, tag = 'sflag constant byte address 0x0 - dummy sync flag']
  #allocation14 [shape = 'u32[0]{0}', space=smem, size = 0, offset = 0, fixed_abs, tag = 'smem constant byte address 0x0 - null']
  #allocation15 [shape = 's32[]', space=sflag, size = 0x4, offset = 0, fixed_abs, tag = 'sflag constant byte address 0x0 - dummy sync flag']
  #allocation16 [shape = 'u32[0]{0}', space=smem, size = 0, offset = 0, fixed_abs, tag = 'smem constant byte address 0x0 - null']
  #allocation17 [shape = 's32[]', space=sflag, size = 0x4, offset = 0, fixed_abs, tag = 'sflag constant byte address 0x0 - dummy sync flag']
  #allocation18 [shape = 'u32[0]{0}', space=smem, size = 0, offset = 0, fixed_abs, tag = 'smem constant byte address 0x0 - null']
  %s0 = inlined_call_operand.hbm [shape: f32[2,1024], index: 0, kind: input, shape index: {}]
  %s1 = inlined_call_operand.hbm [shape: f32[2,1024], index: 1, kind: input, shape index: {}]
  %s2 = inlined_call_operand.hbm [shape: f32[2,1024], index: 2, kind: input, shape index: {}]
  %s3 = inlined_call_operand.hbm [shape: f32[2,1024], index: 3, kind: input, shape index: {}]
  %s4 = inlined_call_operand.hbm [shape: f32[2,1024], index: 4, kind: input, shape index: {}]
  %s5 = inlined_call_operand.hbm [shape: f32[2,1024], index: 5, kind: input, shape index: {}]
  %s6 = inlined_call_operand.hbm [shape: f32[2,6656], index: 6, kind: output, shape index: {}]
  %s7 = sld [smem:[#allocation0]]
  $region2: #{tpu_custom_call.1} parent=0
    _
  %s9 = ssub.s32 1, %s7
  %s10 = scalar_select 0, %s9, %s7
  %s12 = sshll.u32 1, 14
  %s13 = sxor.u32 4294967295, %s12
  %s15 = sshll.u32 %s0, 4
  %s16 = int_to_ptr.hbm [resolvable:$true] %s15
  %s17 = sshll.u32 %s6, 4
  %s18 = int_to_ptr.hbm [resolvable:$true] %s17
  %21 = dma.general %s16, 256, %s18, [#allocation2], [#allocation3], [#allocation4], 0, 0
  %s22 = scalar_lea.hbm %s6, 16
  %s23 = scalar_lea.sflag [#allocation2], 1
  %s25 = sshll.u32 1, 14
  %s26 = sxor.u32 4294967295, %s25
  %s28 = sshll.u32 %s1, 4
  %s29 = int_to_ptr.hbm [resolvable:$true] %s28
  %s30 = sshll.u32 %s22, 4
  %s31 = int_to_ptr.hbm [resolvable:$true] %s30
  %34 = dma.general %s29, 256, %s31, %s23, [#allocation5], [#allocation6], 0, 0
  %s35 = scalar_lea.hbm %s6, 32
  %s36 = scalar_lea.sflag [#allocation2], 2
  %s38 = sshll.u32 1, 14
  %s39 = sxor.u32 4294967295, %s38
  %s41 = sshll.u32 %s2, 4
  %s42 = int_to_ptr.hbm [resolvable:$true] %s41
  %s43 = sshll.u32 %s35, 4
  %s44 = int_to_ptr.hbm [resolvable:$true] %s43
  %47 = dma.general %s42, 256, %s44, %s36, [#allocation7], [#allocation8], 0, 0
  %s48 = scalar_lea.hbm %s6, 48
  %s49 = scalar_lea.sflag [#allocation2], 3
  %s51 = sshll.u32 1, 14
  %s52 = sxor.u32 4294967295, %s51
  %s54 = sshll.u32 %s0, 4
  %s55 = int_to_ptr.hbm [resolvable:$true] %s54
  %s56 = sshll.u32 %s48, 4
  %s57 = int_to_ptr.hbm [resolvable:$true] %s56
  %60 = dma.general %s55, 64, %s57, %s49, [#allocation9], [#allocation10], 0, 0
  %s61 = scalar_lea.hbm %s6, 52
  %s62 = scalar_lea.sflag [#allocation2], 4
  %s64 = sshll.u32 1, 14
  %s65 = sxor.u32 4294967295, %s64
  %s67 = sshll.u32 %s3, 4
  %s68 = int_to_ptr.hbm [resolvable:$true] %s67
  %s69 = sshll.u32 %s61, 4
  %s70 = int_to_ptr.hbm [resolvable:$true] %s69
  %73 = dma.general %s68, 256, %s70, %s62, [#allocation11], [#allocation12], 0, 0
  %s74 = scalar_lea.hbm %s6, 68
  %s75 = scalar_lea.sflag [#allocation2], 5
  %s77 = sshll.u32 1, 14
  %s78 = sxor.u32 4294967295, %s77
  %s80 = sshll.u32 %s4, 4
  %s81 = int_to_ptr.hbm [resolvable:$true] %s80
  %s82 = sshll.u32 %s74, 4
  %s83 = int_to_ptr.hbm [resolvable:$true] %s82
  %86 = dma.general %s81, 256, %s83, %s75, [#allocation13], [#allocation14], 0, 0
  %s87 = scalar_lea.hbm %s6, 84
  %s88 = scalar_lea.sflag [#allocation2], 6
  %s90 = sshll.u32 1, 14
  %s91 = sxor.u32 4294967295, %s90
  %s93 = sshll.u32 %s5, 4
  %s94 = int_to_ptr.hbm [resolvable:$true] %s93
  %s95 = sshll.u32 %s87, 4
  %s96 = int_to_ptr.hbm [resolvable:$true] %s95
  %99 = dma.general %s94, 256, %s96, %s88, [#allocation15], [#allocation16], 0, 0
  %s100 = scalar_lea.hbm %s6, 100
  %s101 = scalar_lea.sflag [#allocation2], 7
  %s103 = sshll.u32 1, 14
  %s104 = sxor.u32 4294967295, %s103
  %s106 = sshll.u32 %s3, 4
  %s107 = int_to_ptr.hbm [resolvable:$true] %s106
  %s108 = sshll.u32 %s100, 4
  %s109 = int_to_ptr.hbm [resolvable:$true] %s108
  %112 = dma.general %s107, 64, %s109, %s101, [#allocation17], [#allocation18], 0, 0
  %s113 = smul.u32 2, 1
  %s114 = smul.u32 %s113, 8
  %s115 = sshll.u32 %s114, 4
  %116 = dma.done [#allocation2], %s115
  %s117 = sshll.u32 %s114, 4
  %118 = dma.done %s23, %s117
  %s119 = sshll.u32 %s114, 4
  %120 = dma.done %s36, %s119
  %s121 = smul.u32 %s113, 2
  %s122 = sshll.u32 %s121, 4
  %123 = dma.done %s49, %s122
  %s124 = sshll.u32 %s114, 4
  %125 = dma.done %s62, %s124
  %s126 = sshll.u32 %s114, 4
  %127 = dma.done %s75, %s126
  %s128 = sshll.u32 %s114, 4
  %129 = dma.done %s88, %s128
  %s130 = sshll.u32 %s121, 4
  %131 = dma.done %s101, %s130
  %132 = vsyncmov [#allocation2]
  %s133 = vpop.sfrf %132
  %p134 = scmp.eq.s32.totalorder %s133, 0
  %p135 = pneg %p134
  %137 = shalt.err (%p135)
  %s138 = scalar_lea.sflag [#allocation2], 1
  %139 = vsyncmov %s138
  %s140 = vpop.sfrf %139
  %p141 = scmp.eq.s32.totalorder %s140, 0
  %p142 = pneg %p141
  %144 = shalt.err (%p142)
  %s145 = scalar_lea.sflag [#allocation2], 2
  %146 = vsyncmov %s145
  %s147 = vpop.sfrf %146
  %p148 = scmp.eq.s32.totalorder %s147, 0
  %p149 = pneg %p148
  %151 = shalt.err (%p149)
  %s152 = scalar_lea.sflag [#allocation2], 3
  %153 = vsyncmov %s152
  %s154 = vpop.sfrf %153
  %p155 = scmp.eq.s32.totalorder %s154, 0
  %p156 = pneg %p155
  %158 = shalt.err (%p156)
  %s159 = scalar_lea.sflag [#allocation2], 4
  %160 = vsyncmov %s159
  %s161 = vpop.sfrf %160
  %p162 = scmp.eq.s32.totalorder %s161, 0
  %p163 = pneg %p162
  %165 = shalt.err (%p163)
  %s166 = scalar_lea.sflag [#allocation2], 5
  %167 = vsyncmov %s166
  %s168 = vpop.sfrf %167
  %p169 = scmp.eq.s32.totalorder %s168, 0
  %p170 = pneg %p169
  %172 = shalt.err (%p170)
  %s173 = scalar_lea.sflag [#allocation2], 6
  %174 = vsyncmov %s173
  %s175 = vpop.sfrf %174
  %p176 = scmp.eq.s32.totalorder %s175, 0
  %p177 = pneg %p176
  %179 = shalt.err (%p177)
  %s180 = scalar_lea.sflag [#allocation2], 7
  %181 = vsyncmov %s180
  %s182 = vpop.sfrf %181
  %p183 = scmp.eq.s32.totalorder %s182, 0
  %p184 = pneg %p183
  %186 = shalt.err (%p184)

</llo_original>
